<compile_context>
chip_gen: v5e
topology: v5e:2x2
jax: 0.10.0
libtpu: 0.0.40
codegen_flags: <defaults>
</compile_context>

<pallas_src>
import jax
import jax.numpy as jnp
from jax.experimental import pallas as pl
from jax.experimental.pallas import tpu as pltpu


def graphsage_kernel(comb_ref, encw_ref, clsw_ref, out_ref):
    # comb_ref: (TN, 2F) f32   encw_ref: (2F, D) bf16   clsw_ref: (D, Cp) f32
    # out_ref : (TN, Cp) bf16
    x = comb_ref[...].astype(jnp.bfloat16)                 # VPU cast; kernel is mem-bound
    # h = relu(W_enc @ combined.T).T == relu(combined @ W_enc.T)      -> (TN, D), f32
    h = jnp.dot(x, encw_ref[...], preferred_element_type=jnp.float32)
    h = jnp.maximum(h, 0.0)
    # scores.t() = (W_cls @ embeds).T == h @ W_cls.T (class-padded)   -> (TN, Cp)
    out_ref[...] = jnp.dot(h, clsw_ref[...],
                           preferred_element_type=jnp.float32).astype(out_ref.dtype)


def _round_up(x, m):
    return ((x + m - 1) // m) * m


def _num_tensorcores():
    # Megacore (2 TCs/chip) only exists on v7x-class parts; v5e/v6e are 1 TC.
    try:
        kind = (getattr(jax.devices()[0], "device_kind", "") or "").lower()
        return 2 if "v7" in kind else 1
    except Exception:
        return 1


def prepare_graphsage_params(enc_w, cls_w):
    """One-time weight repack (do at init, NOT per forward call).

    enc_w: (D, 2F) f32  ->  enc_w_t:  (2F, D)  bf16  (MXU operand, pre-transposed)
    cls_w: (C, D)  f32  ->  cls_w_tp: (D, Cp)  f32   (pre-transposed, classes padded to 128)
    """
    D, _ = enc_w.shape
    C, _ = cls_w.shape
    c_pad = _round_up(C, 128)                               # lane-dense output width
    enc_w_t = enc_w.T.astype(jnp.bfloat16)
    cls_w_tp = jnp.zeros((D, c_pad), jnp.float32).at[:, :C].set(cls_w.T)
    return enc_w_t, cls_w_tp


def supervised_graphsage_forward(combined, enc_w_t, cls_w_tp, num_classes, *, tile_n=4096):
    """combined: (N, 2F) f32, enc_w_t: (2F, D) bf16, cls_w_tp: (D, Cp) f32
    -> (N, num_classes) f32  (== scores.t() of the PyTorch module)."""
    N, F2 = combined.shape
    F2w, D = enc_w_t.shape
    Dw, c_pad = cls_w_tp.shape
    assert F2 == F2w and D == Dw and c_pad % 128 == 0

    # Node tile: as large as useful, clamped to the batch; force >=2 grid steps
    # only when there are 2 TensorCores to shard across (v7x).
    tile_n = min(tile_n, _round_up(N, 128))
    if _num_tensorcores() >= 2:
        tile_n = min(tile_n, _round_up(pl.cdiv(N, 2), 128))
    tile_n = max(128, _round_up(tile_n, 128))

    out_p = pl.pallas_call(
        graphsage_kernel,
        out_shape=jax.ShapeDtypeStruct((N, c_pad), jnp.bfloat16),
        grid_spec=pl.GridSpec(
            grid=(pl.cdiv(N, tile_n),),
            in_specs=[
                pl.BlockSpec((tile_n, F2), lambda i: (i, 0)),   # streamed node tile (f32)
                pl.BlockSpec((F2, D), lambda i: (0, 0)),        # resident encoder weight (bf16)
                pl.BlockSpec((D, c_pad), lambda i: (0, 0)),     # resident classifier weight (f32)
            ],
            out_specs=pl.BlockSpec((tile_n, c_pad), lambda i: (i, 0)),
        ),
        compiler_params=pltpu.CompilerParams(
            dimension_semantics=("parallel",),
            vmem_limit_bytes=32 * 1024 * 1024,   # lets tile_n=4096+ fit v5e's 16 MiB default
        ),
    )(combined, enc_w_t, cls_w_tp)

    # Tiny (N, C) slice; upcast to f32 only because the PyTorch module returns f32.
    # TODO(synk): fuse the downstream softmax/cross-entropy so padded scores never leave VMEM.
    return out_p[:, :num_classes].astype(jnp.float32)


def xavier_uniform(key, shape):
    fan_out, fan_in = shape
    bound = (6.0 / (fan_in + fan_out)) ** 0.5
    return jax.random.uniform(key, shape, jnp.float32, -bound, bound)


if __name__ == "__main__":
    key = jax.random.PRNGKey(0)
    k_feat, k_adj, k_enc, k_cls = jax.random.split(key, 4)

    # Graph / model sizes (small but MXU-friendly).
    num_total_nodes = 512      # nodes in the graph
    feat_dim = 64              # raw feature dim F  (combined = 2F = 128)
    embed_dim = 128            # enc.embed_dim D
    num_classes = 7            # C
    num_batch_nodes = 256      # |nodes| in the forward call

    features = jax.random.normal(k_feat, (num_total_nodes, feat_dim), jnp.float32)
    adj = jax.random.bernoulli(k_adj, 0.05,
                               (num_total_nodes, num_total_nodes)).astype(jnp.float32)
    adj = adj + jnp.eye(num_total_nodes, dtype=jnp.float32)   # guarantee >=1 neighbor
    mask = adj / jnp.sum(adj, axis=1, keepdims=True)          # row-normalized mean mask

    nodes = jnp.arange(num_batch_nodes, dtype=jnp.int32)

    # Encoder input = cat([self_feats, mean(neigh_feats)], dim=1)  -> (N, 2F).
    # TODO(synk): fuse this gather/mean-aggregation into the kernel via scalar-prefetched node ids so `combined` never hits HBM.
    self_feats = features[nodes]
    neigh_feats = (mask @ features)[nodes]
    combined = jnp.concatenate([self_feats, neigh_feats], axis=1)

    # Deterministic parameter init (shapes from the PyTorch __init__ / encoder).
    enc_w = xavier_uniform(k_enc, (embed_dim, 2 * feat_dim))      # encoder weight (D, 2F)
    cls_w = xavier_uniform(k_cls, (num_classes, embed_dim))       # self.weight   (C, D)

    # One-time weight prep (init-time, not per call).
    enc_w_t, cls_w_tp = prepare_graphsage_params(enc_w, cls_w)

    fwd = jax.jit(lambda c: supervised_graphsage_forward(c, enc_w_t, cls_w_tp, num_classes))
    scores_t = jax.block_until_ready(fwd(combined))
    assert scores_t.shape == (num_batch_nodes, num_classes)
    assert scores_t.dtype == jnp.float32

    # Reference A: same mixed precision as the kernel (bf16 first dot w/ f32 acc,
    # f32 second dot, bf16-rounded store) -- checks the kernel math.
    h_a = jnp.maximum(jnp.dot(combined.astype(jnp.bfloat16),
                              enc_w.T.astype(jnp.bfloat16),
                              preferred_element_type=jnp.float32), 0.0)
    ref_a = jnp.dot(h_a, cls_w.T, preferred_element_type=jnp.float32)
    ref_a = ref_a.astype(jnp.bfloat16).astype(jnp.float32)
    assert jnp.allclose(scores_t, ref_a, atol=2e-2, rtol=2e-2)

    # Reference B: full-f32 PyTorch-semantics forward (looser tolerance: the kernel
    # uses bf16 first-matmul operands and a bf16 output store).
    embeds_ref = jnp.maximum(enc_w @ combined.T, 0.0)     # (D, N)
    ref_b = (cls_w @ embeds_ref).T                        # (N, C) == scores.t()
    assert jnp.allclose(scores_t, ref_b, atol=5e-2, rtol=5e-2)

    print("KERNEL_OK")
</pallas_src>

<mosaic_0001>
module attributes {stable_mosaic.version = 11 : i64} {
  func.func @graphsage_kernel(%arg0: i32, %arg1: memref<256x128xf32, #tpu.memory_space<vmem>>, %arg2: memref<128x128xbf16, #tpu.memory_space<vmem>>, %arg3: memref<128x128xf32, #tpu.memory_space<vmem>>, %arg4: memref<256x128xbf16, #tpu.memory_space<vmem>>) attributes {dimension_semantics = [#tpu.dimension_semantics<parallel>], iteration_bounds = array<i64: 1>, scalar_prefetch = 0 : i64, scratch_operands = 0 : i64, tpu.core_type = #tpu.core_type<tc>, window_params = [{transform_indices = @transform_0, window_bounds = array<i64: 256, 128>}, {pipeline_mode = #tpu.pipeline_mode<synchronous>, transform_indices = @transform_1, window_bounds = array<i64: 128, 128>}, {pipeline_mode = #tpu.pipeline_mode<synchronous>, transform_indices = @transform_2, window_bounds = array<i64: 128, 128>}, {transform_indices = @transform_3, window_bounds = array<i64: 256, 128>}]} {
    %c0 = arith.constant 0 : index
    %c0_0 = arith.constant 0 : index
    %0 = vector.load %arg1[%c0, %c0_0] : memref<256x128xf32, #tpu.memory_space<vmem>>, vector<256x128xf32>
    %1 = arith.truncf %0 : vector<256x128xf32> to vector<256x128xbf16>
    %c0_1 = arith.constant 0 : index
    %c0_2 = arith.constant 0 : index
    %2 = vector.load %arg2[%c0_1, %c0_2] : memref<128x128xbf16, #tpu.memory_space<vmem>>, vector<128x128xbf16>
    %cst = arith.constant dense<0.000000e+00> : vector<256x128xf32>
    %3 = tpu.matmul %1, %2, %cst {dimension_numbers = #tpu.dot_dimension_numbers<[1], [0], [0], [1], [0, 0, 1, 1], [], []>} : vector<256x128xbf16>, vector<128x128xbf16>, vector<256x128xf32> -> vector<256x128xf32>
    %cst_3 = arith.constant 0.000000e+00 : f32
    %4 = vector.broadcast %cst_3 : f32 to vector<256x128xf32>
    %5 = arith.maximumf %3, %4 : vector<256x128xf32>
    %c0_4 = arith.constant 0 : index
    %c0_5 = arith.constant 0 : index
    %6 = vector.load %arg3[%c0_4, %c0_5] : memref<128x128xf32, #tpu.memory_space<vmem>>, vector<128x128xf32>
    %cst_6 = arith.constant dense<0.000000e+00> : vector<256x128xf32>
    %7 = tpu.matmul %5, %6, %cst_6 {dimension_numbers = #tpu.dot_dimension_numbers<[1], [0], [0], [1], [0, 0, 1, 1], [], []>} : vector<256x128xf32>, vector<128x128xf32>, vector<256x128xf32> -> vector<256x128xf32>
    %8 = arith.truncf %7 : vector<256x128xf32> to vector<256x128xbf16>
    %c0_7 = arith.constant 0 : index
    %c0_8 = arith.constant 0 : index
    %9 = vector.load %arg4[%c0_7, %c0_8] : memref<256x128xbf16, #tpu.memory_space<vmem>>, vector<256x128xbf16>
    tpu.vector_store %arg4[%c0_7, %c0_8], %8 {strides = array<i32>} : memref<256x128xbf16, #tpu.memory_space<vmem>>, vector<256x128xbf16>,
    return
  }
  func.func @transform_0(%arg0: i32) -> (i32, i32) {
    %c0_i32 = arith.constant 0 : i32
    %c0_i32_0 = arith.constant 0 : i32
    return %arg0, %c0_i32 : i32, i32
  }
  func.func @transform_1(%arg0: i32) -> (i32, i32) {
    %c0_i32 = arith.constant 0 : i32
    %c0_i32_0 = arith.constant 0 : i32
    %c0_i32_1 = arith.constant 0 : i32
    return %c0_i32, %c0_i32_0 : i32, i32
  }
  func.func @transform_2(%arg0: i32) -> (i32, i32) {
    %c0_i32 = arith.constant 0 : i32
    %c0_i32_0 = arith.constant 0 : i32
    %c0_i32_1 = arith.constant 0 : i32
    return %c0_i32, %c0_i32_0 : i32, i32
  }
  func.func @transform_3(%arg0: i32) -> (i32, i32) {
    %c0_i32 = arith.constant 0 : i32
    %c0_i32_0 = arith.constant 0 : i32
    return %arg0, %c0_i32 : i32, i32
  }
}

</mosaic_0001>

<llo_original>
// kernel: _lambda_.1
$region0: #{_lambda_.1}
  #allocation0 [shape = 'u32[]', space=smem, size = 0x4, offset = 0x4, fixed_abs, tag = 'smem constant byte address 0x4 - core index']
  #allocation1 [shape = 'u32[72,128]{1,0:T(1,128)}', space=vmem, size = 0x9000, scoped, tag = 'internal scratch']
  %s0 = inlined_call_operand.hbm [shape: f32[256,128], index: 0, kind: input, shape index: {}]
  %s1 = inlined_call_operand.hbm [shape: bf16[128,128], index: 1, kind: input, shape index: {}]
  %s2 = inlined_call_operand.hbm [shape: f32[128,128], index: 2, kind: input, shape index: {}]
  %s3 = inlined_call_operand.vmem [shape: bf16[256,128], index: 3, kind: output, shape index: {}]
  %s4 = sld [smem:[#allocation0]]
  $region34: #{_lambda_.1} parent=0
    _
  %s6 = ssub.s32 1, %s4
  %s7 = scalar_select 0, %s6, %s4
  $region1: #{_lambda_.1} parent=0
    #allocation2 [shape = 'u8[131072]{0}', space=vmem, size = 0x20000, scoped, tag = 'input window, operand 0, single buffered']
    #allocation3 [shape = 's32[1]{0}', space=sflag, size = 0x4, scoped, tag = 'scoped memory for _lambda_.1']
    #allocation4 [shape = 'u8[32768]{0}', space=vmem, size = 0x8000, scoped, tag = 'input window, operand 1, single buffered']
    #allocation5 [shape = 's32[1]{0}', space=sflag, size = 0x4, scoped, tag = 'scoped memory for _lambda_.1']
    #allocation6 [shape = 'u8[65536]{0}', space=vmem, size = 0x10000, scoped, tag = 'input window, operand 2, single buffered']
    %8 = vsyncpa [#allocation3], 0
    %9 = vsyncpa [#allocation5], 0
    // Predicated region
    $region2: #{_lambda_.1} parent=1 // pred_check
      _
    $region3: #{_lambda_.1} parent=1 // pred_check_branch
      %11 = sbr.rel (0) target = $region5
    $region4: #{_lambda_.1} parent=1 // pred_region
      %13 = vsyncadd [#allocation3], 0
      %s14 = sshll.u32 %s0, 4
      %s15 = int_to_ptr.hbm [resolvable:$true] %s14
      %s16 = sshll.u32 [#allocation2], 4
      %s17 = int_to_ptr.vmem [resolvable:$true] %s16
      %22 = dma.hbm_to_vmem [thread:$0]  %s15, 4096, %s17, [#allocation3], 128, 128, 8
    $region5: #{_lambda_.1} parent=1 // pred_fallthru
      _
    // Predicated region
    $region6: #{_lambda_.1} parent=1 // pred_check
      _
    $region7: #{_lambda_.1} parent=1 // pred_check_branch
      %24 = sbr.rel (0) target = $region9
    $region8: #{_lambda_.1} parent=1 // pred_region
      %26 = vsyncadd [#allocation5], 0
      %s27 = sshll.u32 %s1, 4
      %s28 = int_to_ptr.hbm [resolvable:$true] %s27
      %s29 = sshll.u32 [#allocation4], 4
      %s30 = int_to_ptr.vmem [resolvable:$true] %s29
      %35 = dma.hbm_to_vmem [thread:$0]  %s28, 1024, %s30, [#allocation5], 64, 64, 4
    $region9: #{_lambda_.1} parent=1 // pred_fallthru
      _
    // Predicated region
    $region10: #{_lambda_.1} parent=1 // pred_check
      _
    $region11: #{_lambda_.1} parent=1 // pred_check_branch
      %37 = sbr.rel (0) target = $region13
    $region12: #{_lambda_.1} parent=1 // pred_region
      %39 = vsyncadd [#allocation5], 0
      %s40 = sshll.u32 %s2, 4
      %s41 = int_to_ptr.hbm [resolvable:$true] %s40
      %s42 = sshll.u32 [#allocation6], 4
      %s43 = int_to_ptr.vmem [resolvable:$true] %s42
      %48 = dma.hbm_to_vmem [thread:$0]  %s41, 2048, %s43, [#allocation5], 128, 128, 8
    $region13: #{_lambda_.1} parent=1 // pred_fallthru
      _
    // Predicated region
    $region14: #{_lambda_.1} parent=1 // pred_check
      _
    $region15: #{_lambda_.1} parent=1 // pred_check_branch
      %50 = sbr.rel (0) target = $region17
    $region16: #{_lambda_.1} parent=1 // pred_region
      %52 = dma.done [#allocation3], 4096
    $region17: #{_lambda_.1} parent=1 // pred_fallthru
      _
    // Predicated region
    $region18: #{_lambda_.1} parent=1 // pred_check
      _
    $region19: #{_lambda_.1} parent=1 // pred_check_branch
      %54 = sbr.rel (0) target = $region21
    $region20: #{_lambda_.1} parent=1 // pred_region
      %56 = dma.done [#allocation5], 1024
    $region21: #{_lambda_.1} parent=1 // pred_fallthru
      _
    // Predicated region
    $region22: #{_lambda_.1} parent=1 // pred_check
      _
    $region23: #{_lambda_.1} parent=1 // pred_check_branch
      %58 = sbr.rel (0) target = $region25
    $region24: #{_lambda_.1} parent=1 // pred_region
      %60 = dma.done [#allocation5], 2048
    $region25: #{_lambda_.1} parent=1 // pred_fallthru
      _
    %v61 = vld [vmem:[#allocation2] sm:$0xff]
    %v62 = vld [vmem:[#allocation2 + $0x8] sm:$0xff]
    %v63 = vld [vmem:[#allocation2 + $0x10] sm:$0xff]
    %v64 = vld [vmem:[#allocation2 + $0x18] sm:$0xff]
    %v65 = vld [vmem:[#allocation2 + $0x20] sm:$0xff]
    %v66 = vld [vmem:[#allocation2 + $0x28] sm:$0xff]
    %v67 = vld [vmem:[#allocation2 + $0x30] sm:$0xff]
    %v68 = vld [vmem:[#allocation2 + $0x38] sm:$0xff]
    %v69 = vld [vmem:[#allocation2 + $0x40] sm:$0xff]
    %v70 = vld [vmem:[#allocation2 + $0x48] sm:$0xff]
    %v71 = vld [vmem:[#allocation2 + $0x50] sm:$0xff]
    %v72 = vld [vmem:[#allocation2 + $0x58] sm:$0xff]
    %v73 = vld [vmem:[#allocation2 + $0x60] sm:$0xff]
    %v74 = vld [vmem:[#allocation2 + $0x68] sm:$0xff]
    %v75 = vld [vmem:[#allocation2 + $0x70] sm:$0xff]
    %v76 = vld [vmem:[#allocation2 + $0x78] sm:$0xff]
    %v77 = vld [vmem:[#allocation2 + $0x80] sm:$0xff]
    %v78 = vld [vmem:[#allocation2 + $0x88] sm:$0xff]
    %v79 = vld [vmem:[#allocation2 + $0x90] sm:$0xff]
    %v80 = vld [vmem:[#allocation2 + $0x98] sm:$0xff]
    %v81 = vld [vmem:[#allocation2 + $0xa0] sm:$0xff]
    %v82 = vld [vmem:[#allocation2 + $0xa8] sm:$0xff]
    %v83 = vld [vmem:[#allocation2 + $0xb0] sm:$0xff]
    %v84 = vld [vmem:[#allocation2 + $0xb8] sm:$0xff]
    %v85 = vld [vmem:[#allocation2 + $0xc0] sm:$0xff]
    %v86 = vld [vmem:[#allocation2 + $0xc8] sm:$0xff]
    %v87 = vld [vmem:[#allocation2 + $0xd0] sm:$0xff]
    %v88 = vld [vmem:[#allocation2 + $0xd8] sm:$0xff]
    %v89 = vld [vmem:[#allocation2 + $0xe0] sm:$0xff]
    %v90 = vld [vmem:[#allocation2 + $0xe8] sm:$0xff]
    %v91 = vld [vmem:[#allocation2 + $0xf0] sm:$0xff]
    %v92 = vld [vmem:[#allocation2 + $0xf8] sm:$0xff]
    %v93 = vpack.c.bf16 %v62, %v61
    %v94 = vpack.c.bf16 %v64, %v63
    %v95 = vpack.c.bf16 %v66, %v65
    %v96 = vpack.c.bf16 %v68, %v67
    %v97 = vpack.c.bf16 %v70, %v69
    %v98 = vpack.c.bf16 %v72, %v71
    %v99 = vpack.c.bf16 %v74, %v73
    %v100 = vpack.c.bf16 %v76, %v75
    %v101 = vpack.c.bf16 %v78, %v77
    %v102 = vpack.c.bf16 %v80, %v79
    %v103 = vpack.c.bf16 %v82, %v81
    %v104 = vpack.c.bf16 %v84, %v83
    %v105 = vpack.c.bf16 %v86, %v85
    %v106 = vpack.c.bf16 %v88, %v87
    %v107 = vpack.c.bf16 %v90, %v89
    %v108 = vpack.c.bf16 %v92, %v91
    %v109 = vld [vmem:[#allocation4] sm:$0xf]
    %v110 = vld [vmem:[#allocation4 + $0x4] sm:$0xf]
    %v111 = vld [vmem:[#allocation4 + $0x8] sm:$0xf]
    %v112 = vld [vmem:[#allocation4 + $0xc] sm:$0xf]
    %v113 = vld [vmem:[#allocation4 + $0x10] sm:$0xf]
    %v114 = vld [vmem:[#allocation4 + $0x14] sm:$0xf]
    %v115 = vld [vmem:[#allocation4 + $0x18] sm:$0xf]
    %v116 = vld [vmem:[#allocation4 + $0x1c] sm:$0xf]
    %v117 = vld [vmem:[#allocation4 + $0x20] sm:$0xf]
    %v118 = vld [vmem:[#allocation4 + $0x24] sm:$0xf]
    %v119 = vld [vmem:[#allocation4 + $0x28] sm:$0xf]
    %v120 = vld [vmem:[#allocation4 + $0x2c] sm:$0xf]
    %v121 = vld [vmem:[#allocation4 + $0x30] sm:$0xf]
    %v122 = vld [vmem:[#allocation4 + $0x34] sm:$0xf]
    %v123 = vld [vmem:[#allocation4 + $0x38] sm:$0xf]
    %v124 = vld [vmem:[#allocation4 + $0x3c] sm:$0xf]
    %v141 = vunpack.c.l.b16 %v109
    %v142 = vunpack.c.l.b16 %v110
    %v143 = vunpack.c.l.b16 %v111
    %v144 = vunpack.c.l.b16 %v112
    %v145 = vunpack.c.l.b16 %v113
    %v146 = vunpack.c.l.b16 %v114
    %v147 = vunpack.c.l.b16 %v115
    %v148 = vunpack.c.l.b16 %v116
    %v149 = vunpack.c.l.b16 %v117
    %v150 = vunpack.c.l.b16 %v118
    %v151 = vunpack.c.l.b16 %v119
    %v152 = vunpack.c.l.b16 %v120
    %v153 = vunpack.c.l.b16 %v121
    %v154 = vunpack.c.l.b16 %v122
    %v155 = vunpack.c.l.b16 %v123
    %v156 = vunpack.c.l.b16 %v124
    %v157 = vpack.c.b16 %v142, %v141
    %v158 = vpack.c.b16 %v144, %v143
    %v159 = vpack.c.b16 %v146, %v145
    %v160 = vpack.c.b16 %v148, %v147
    %v161 = vpack.c.b16 %v150, %v149
    %v162 = vpack.c.b16 %v152, %v151
    %v163 = vpack.c.b16 %v154, %v153
    %v164 = vpack.c.b16 %v156, %v155
    %173 = vmatpush.bf16.msra.mxu0 %v164
    %174 = vmatpush.bf16.msra.mxu0 %v163
    %175 = vmatpush.bf16.msra.mxu0 %v162
    %176 = vmatpush.bf16.msra.mxu0 %v161
    %177 = vmatpush.bf16.msra.mxu0 %v160
    %178 = vmatpush.bf16.msra.mxu0 %v159
    %179 = vmatpush.bf16.msra.mxu0 %v158
    %180 = vmatpush.bf16.msra.mxu0 %v157
    %181 = vmatmul.bf16.gmra.mxu0 %v93
    %v182 = vpop.f32.mrf.mxu0
    %v183 = vadd.f32 0.0, %v182
    %v184 = vpop.f32.mrf.mxu0
    %v185 = vadd.f32 0.0, %v184
    %186 = vmatmul.bf16.gmra.mxu0 %v94
    %v187 = vpop.f32.mrf.mxu0
    %v188 = vadd.f32 0.0, %v187
    %v189 = vpop.f32.mrf.mxu0
    %v190 = vadd.f32 0.0, %v189
    %191 = vmatmul.bf16.gmra.mxu0 %v95
    %v192 = vpop.f32.mrf.mxu0
    %v193 = vadd.f32 0.0, %v192
    %v194 = vpop.f32.mrf.mxu0
    %v195 = vadd.f32 0.0, %v194
    %196 = vmatmul.bf16.gmra.mxu0 %v96
    %v197 = vpop.f32.mrf.mxu0
    %v198 = vadd.f32 0.0, %v197
    %v199 = vpop.f32.mrf.mxu0
    %v200 = vadd.f32 0.0, %v199
    %201 = vmatmul.bf16.gmra.mxu0 %v97
    %v202 = vpop.f32.mrf.mxu0
    %v203 = vadd.f32 0.0, %v202
    %v204 = vpop.f32.mrf.mxu0
    %v205 = vadd.f32 0.0, %v204
    %206 = vmatmul.bf16.gmra.mxu0 %v98
    %v207 = vpop.f32.mrf.mxu0
    %v208 = vadd.f32 0.0, %v207
    %v209 = vpop.f32.mrf.mxu0
    %v210 = vadd.f32 0.0, %v209
    %211 = vmatmul.bf16.gmra.mxu0 %v99
    %v212 = vpop.f32.mrf.mxu0
    %v213 = vadd.f32 0.0, %v212
    %v214 = vpop.f32.mrf.mxu0
    %v215 = vadd.f32 0.0, %v214
    %216 = vmatmul.bf16.gmra.mxu0 %v100
    %v217 = vpop.f32.mrf.mxu0
    %v218 = vadd.f32 0.0, %v217
    %v219 = vpop.f32.mrf.mxu0
    %v220 = vadd.f32 0.0, %v219
    %221 = vmatmul.bf16.gmra.mxu0 %v101
    %v222 = vpop.f32.mrf.mxu0
    %v223 = vadd.f32 0.0, %v222
    %v224 = vpop.f32.mrf.mxu0
    %v225 = vadd.f32 0.0, %v224
    %226 = vmatmul.bf16.gmra.mxu0 %v102
    %v227 = vpop.f32.mrf.mxu0
    %v228 = vadd.f32 0.0, %v227
    %v229 = vpop.f32.mrf.mxu0
    %v230 = vadd.f32 0.0, %v229
    %231 = vmatmul.bf16.gmra.mxu0 %v103
    %v232 = vpop.f32.mrf.mxu0
    %v233 = vadd.f32 0.0, %v232
    %v234 = vpop.f32.mrf.mxu0
    %v235 = vadd.f32 0.0, %v234
    %236 = vmatmul.bf16.gmra.mxu0 %v104
    %v237 = vpop.f32.mrf.mxu0
    %v238 = vadd.f32 0.0, %v237
    %v239 = vpop.f32.mrf.mxu0
    %v240 = vadd.f32 0.0, %v239
    %241 = vmatmul.bf16.gmra.mxu0 %v105
    %v242 = vpop.f32.mrf.mxu0
    %v243 = vadd.f32 0.0, %v242
    %v244 = vpop.f32.mrf.mxu0
    %v245 = vadd.f32 0.0, %v244
    %246 = vmatmul.bf16.gmra.mxu0 %v106
    %v247 = vpop.f32.mrf.mxu0
    %v248 = vadd.f32 0.0, %v247
    %v249 = vpop.f32.mrf.mxu0
    %v250 = vadd.f32 0.0, %v249
    %251 = vmatmul.bf16.gmra.mxu0 %v107
    %v252 = vpop.f32.mrf.mxu0
    %v253 = vadd.f32 0.0, %v252
    %v254 = vpop.f32.mrf.mxu0
    %v255 = vadd.f32 0.0, %v254
    %256 = vmatmul.bf16.gmra.mxu0 %v108
    %v257 = vpop.f32.mrf.mxu0
    %v258 = vadd.f32 0.0, %v257
    %v259 = vpop.f32.mrf.mxu0
    %v260 = vadd.f32 0.0, %v259
    %261 = vdwg.mxu0
    %v262 = vmax.f32 %v183, 0.0
    %v263 = vmax.f32 %v185, 0.0
    %v264 = vmax.f32 %v188, 0.0
    %v265 = vmax.f32 %v190, 0.0
    %v266 = vmax.f32 %v193, 0.0
    %v267 = vmax.f32 %v195, 0.0
    %v268 = vmax.f32 %v198, 0.0
    %v269 = vmax.f32 %v200, 0.0
    %v270 = vmax.f32 %v203, 0.0
    %v271 = vmax.f32 %v205, 0.0
    %v272 = vmax.f32 %v208, 0.0
    %v273 = vmax.f32 %v210, 0.0
    %v274 = vmax.f32 %v213, 0.0
    %v275 = vmax.f32 %v215, 0.0
    %v276 = vmax.f32 %v218, 0.0
    %v277 = vmax.f32 %v220, 0.0
    %v278 = vmax.f32 %v223, 0.0
    %v279 = vmax.f32 %v225, 0.0
    %v280 = vmax.f32 %v228, 0.0
    %v281 = vmax.f32 %v230, 0.0
    %v282 = vmax.f32 %v233, 0.0
    %v283 = vmax.f32 %v235, 0.0
    %v284 = vmax.f32 %v238, 0.0
    %v285 = vmax.f32 %v240, 0.0
    %v286 = vmax.f32 %v243, 0.0
    %v287 = vmax.f32 %v245, 0.0
    %v288 = vmax.f32 %v248, 0.0
    %v289 = vmax.f32 %v250, 0.0
    %v290 = vmax.f32 %v253, 0.0
    %v291 = vmax.f32 %v255, 0.0
    %v292 = vmax.f32 %v258, 0.0
    %v293 = vmax.f32 %v260, 0.0
    %v294 = vld [vmem:[#allocation6] sm:$0xff]
    %v295 = vld [vmem:[#allocation6 + $0x8] sm:$0xff]
    %v296 = vld [vmem:[#allocation6 + $0x10] sm:$0xff]
    %v297 = vld [vmem:[#allocation6 + $0x18] sm:$0xff]
    %v298 = vld [vmem:[#allocation6 + $0x20] sm:$0xff]
    %v299 = vld [vmem:[#allocation6 + $0x28] sm:$0xff]
    %v300 = vld [vmem:[#allocation6 + $0x30] sm:$0xff]
    %v301 = vld [vmem:[#allocation6 + $0x38] sm:$0xff]
    %v302 = vld [vmem:[#allocation6 + $0x40] sm:$0xff]
    %v303 = vld [vmem:[#allocation6 + $0x48] sm:$0xff]
    %v304 = vld [vmem:[#allocation6 + $0x50] sm:$0xff]
    %v305 = vld [vmem:[#allocation6 + $0x58] sm:$0xff]
    %v306 = vld [vmem:[#allocation6 + $0x60] sm:$0xff]
    %v307 = vld [vmem:[#allocation6 + $0x68] sm:$0xff]
    %v308 = vld [vmem:[#allocation6 + $0x70] sm:$0xff]
    %v309 = vld [vmem:[#allocation6 + $0x78] sm:$0xff]
    %310 = vmatpush.msra.mxu0 %v309
    %311 = vmatpush.msra.mxu0 %v308
    %312 = vmatpush.msra.mxu0 %v307
    %313 = vmatpush.msra.mxu0 %v306
    %314 = vmatpush.msra.mxu0 %v305
    %315 = vmatpush.msra.mxu0 %v304
    %316 = vmatpush.msra.mxu0 %v303
    %317 = vmatpush.msra.mxu0 %v302
    %318 = vmatpush.msra.mxu0 %v301
    %319 = vmatpush.msra.mxu0 %v300
    %320 = vmatpush.msra.mxu0 %v299
    %321 = vmatpush.msra.mxu0 %v298
    %322 = vmatpush.msra.mxu0 %v297
    %323 = vmatpush.msra.mxu0 %v296
    %324 = vmatpush.msra.mxu0 %v295
    %325 = vmatpush.msra.mxu0 %v294
    %326 = vmatmul.f32.gmra.mxu0 %v262
    %v327 = vpop.f32.mrf.mxu0
    %v328 = vadd.f32 0.0, %v327
    %329 = vmatmul.f32.gmra.mxu0 %v263
    %v330 = vpop.f32.mrf.mxu0
    %v331 = vadd.f32 0.0, %v330
    %332 = vmatmul.f32.gmra.mxu0 %v264
    %v333 = vpop.f32.mrf.mxu0
    %v334 = vadd.f32 0.0, %v333
    %335 = vmatmul.f32.gmra.mxu0 %v265
    %v336 = vpop.f32.mrf.mxu0
    %v337 = vadd.f32 0.0, %v336
    %338 = vmatmul.f32.gmra.mxu0 %v266
    %v339 = vpop.f32.mrf.mxu0
    %v340 = vadd.f32 0.0, %v339
    %341 = vmatmul.f32.gmra.mxu0 %v267
    %v342 = vpop.f32.mrf.mxu0
    %v343 = vadd.f32 0.0, %v342
    %344 = vmatmul.f32.gmra.mxu0 %v268
    %v345 = vpop.f32.mrf.mxu0
    %v346 = vadd.f32 0.0, %v345
    %347 = vmatmul.f32.gmra.mxu0 %v269
    %v348 = vpop.f32.mrf.mxu0
    %v349 = vadd.f32 0.0, %v348
    %350 = vmatmul.f32.gmra.mxu0 %v270
    %v351 = vpop.f32.mrf.mxu0
    %v352 = vadd.f32 0.0, %v351
    %353 = vmatmul.f32.gmra.mxu0 %v271
    %v354 = vpop.f32.mrf.mxu0
    %v355 = vadd.f32 0.0, %v354
    %356 = vmatmul.f32.gmra.mxu0 %v272
    %v357 = vpop.f32.mrf.mxu0
    %v358 = vadd.f32 0.0, %v357
    %359 = vmatmul.f32.gmra.mxu0 %v273
    %v360 = vpop.f32.mrf.mxu0
    %v361 = vadd.f32 0.0, %v360
    %362 = vmatmul.f32.gmra.mxu0 %v274
    %v363 = vpop.f32.mrf.mxu0
    %v364 = vadd.f32 0.0, %v363
    %365 = vmatmul.f32.gmra.mxu0 %v275
    %v366 = vpop.f32.mrf.mxu0
    %v367 = vadd.f32 0.0, %v366
    %368 = vmatmul.f32.gmra.mxu0 %v276
    %v369 = vpop.f32.mrf.mxu0
    %v370 = vadd.f32 0.0, %v369
    %371 = vmatmul.f32.gmra.mxu0 %v277
    %v372 = vpop.f32.mrf.mxu0
    %v373 = vadd.f32 0.0, %v372
    %374 = vmatmul.f32.gmra.mxu0 %v278
    %v375 = vpop.f32.mrf.mxu0
    %v376 = vadd.f32 0.0, %v375
    %377 = vmatmul.f32.gmra.mxu0 %v279
    %v378 = vpop.f32.mrf.mxu0
    %v379 = vadd.f32 0.0, %v378
    %380 = vmatmul.f32.gmra.mxu0 %v280
    %v381 = vpop.f32.mrf.mxu0
    %v382 = vadd.f32 0.0, %v381
    %383 = vmatmul.f32.gmra.mxu0 %v281
    %v384 = vpop.f32.mrf.mxu0
    %v385 = vadd.f32 0.0, %v384
    %386 = vmatmul.f32.gmra.mxu0 %v282
    %v387 = vpop.f32.mrf.mxu0
    %v388 = vadd.f32 0.0, %v387
    %389 = vmatmul.f32.gmra.mxu0 %v283
    %v390 = vpop.f32.mrf.mxu0
    %v391 = vadd.f32 0.0, %v390
    %392 = vmatmul.f32.gmra.mxu0 %v284
    %v393 = vpop.f32.mrf.mxu0
    %v394 = vadd.f32 0.0, %v393
    %395 = vmatmul.f32.gmra.mxu0 %v285
    %v396 = vpop.f32.mrf.mxu0
    %v397 = vadd.f32 0.0, %v396
    %398 = vmatmul.f32.gmra.mxu0 %v286
    %v399 = vpop.f32.mrf.mxu0
    %v400 = vadd.f32 0.0, %v399
    %401 = vmatmul.f32.gmra.mxu0 %v287
    %v402 = vpop.f32.mrf.mxu0
    %v403 = vadd.f32 0.0, %v402
    %404 = vmatmul.f32.gmra.mxu0 %v288
    %v405 = vpop.f32.mrf.mxu0
    %v406 = vadd.f32 0.0, %v405
    %407 = vmatmul.f32.gmra.mxu0 %v289
    %v408 = vpop.f32.mrf.mxu0
    %v409 = vadd.f32 0.0, %v408
    %410 = vmatmul.f32.gmra.mxu0 %v290
    %v411 = vpop.f32.mrf.mxu0
    %v412 = vadd.f32 0.0, %v411
    %413 = vmatmul.f32.gmra.mxu0 %v291
    %v414 = vpop.f32.mrf.mxu0
    %v415 = vadd.f32 0.0, %v414
    %416 = vmatmul.f32.gmra.mxu0 %v292
    %v417 = vpop.f32.mrf.mxu0
    %v418 = vadd.f32 0.0, %v417
    %419 = vmatmul.f32.gmra.mxu0 %v293
    %v420 = vpop.f32.mrf.mxu0
    %v421 = vadd.f32 0.0, %v420
    %422 = vdwg.mxu0
    %v423 = vpack.c.bf16 %v328, %v328
    %v424 = vpack.c.bf16 %v331, %v331
    %v425 = vpack.c.bf16 %v334, %v334
    %v426 = vpack.c.bf16 %v337, %v337
    %v427 = vpack.c.bf16 %v340, %v340
    %v428 = vpack.c.bf16 %v343, %v343
    %v429 = vpack.c.bf16 %v346, %v346
    %v430 = vpack.c.bf16 %v349, %v349
    %v431 = vpack.c.bf16 %v352, %v352
    %v432 = vpack.c.bf16 %v355, %v355
    %v433 = vpack.c.bf16 %v358, %v358
    %v434 = vpack.c.bf16 %v361, %v361
    %v435 = vpack.c.bf16 %v364, %v364
    %v436 = vpack.c.bf16 %v367, %v367
    %v437 = vpack.c.bf16 %v370, %v370
    %v438 = vpack.c.bf16 %v373, %v373
    %v439 = vpack.c.bf16 %v376, %v376
    %v440 = vpack.c.bf16 %v379, %v379
    %v441 = vpack.c.bf16 %v382, %v382
    %v442 = vpack.c.bf16 %v385, %v385
    %v443 = vpack.c.bf16 %v388, %v388
    %v444 = vpack.c.bf16 %v391, %v391
    %v445 = vpack.c.bf16 %v394, %v394
    %v446 = vpack.c.bf16 %v397, %v397
    %v447 = vpack.c.bf16 %v400, %v400
    %v448 = vpack.c.bf16 %v403, %v403
    %v449 = vpack.c.bf16 %v406, %v406
    %v450 = vpack.c.bf16 %v409, %v409
    %v451 = vpack.c.bf16 %v412, %v412
    %v452 = vpack.c.bf16 %v415, %v415
    %v453 = vpack.c.bf16 %v418, %v418
    %v454 = vpack.c.bf16 %v421, %v421
    %455 = vst [vmem:[%s3] sm:$0xf] %v423
    %456 = vst [vmem:[%s3 + $0x4] sm:$0xf] %v424
    %457 = vst [vmem:[%s3 + $0x8] sm:$0xf] %v425
    %458 = vst [vmem:[%s3 + $0xc] sm:$0xf] %v426
    %459 = vst [vmem:[%s3 + $0x10] sm:$0xf] %v427
    %460 = vst [vmem:[%s3 + $0x14] sm:$0xf] %v428
    %461 = vst [vmem:[%s3 + $0x18] sm:$0xf] %v429
    %462 = vst [vmem:[%s3 + $0x1c] sm:$0xf] %v430
    %463 = vst [vmem:[%s3 + $0x20] sm:$0xf] %v431
    %464 = vst [vmem:[%s3 + $0x24] sm:$0xf] %v432
    %465 = vst [vmem:[%s3 + $0x28] sm:$0xf] %v433
    %466 = vst [vmem:[%s3 + $0x2c] sm:$0xf] %v434
    %467 = vst [vmem:[%s3 + $0x30] sm:$0xf] %v435
    %468 = vst [vmem:[%s3 + $0x34] sm:$0xf] %v436
    %469 = vst [vmem:[%s3 + $0x38] sm:$0xf] %v437
    %470 = vst [vmem:[%s3 + $0x3c] sm:$0xf] %v438
    %471 = vst [vmem:[%s3 + $0x40] sm:$0xf] %v439
    %472 = vst [vmem:[%s3 + $0x44] sm:$0xf] %v440
    %473 = vst [vmem:[%s3 + $0x48] sm:$0xf] %v441
    %474 = vst [vmem:[%s3 + $0x4c] sm:$0xf] %v442
    %475 = vst [vmem:[%s3 + $0x50] sm:$0xf] %v443
    %476 = vst [vmem:[%s3 + $0x54] sm:$0xf] %v444
    %477 = vst [vmem:[%s3 + $0x58] sm:$0xf] %v445
    %478 = vst [vmem:[%s3 + $0x5c] sm:$0xf] %v446
    %479 = vst [vmem:[%s3 + $0x60] sm:$0xf] %v447
    %480 = vst [vmem:[%s3 + $0x64] sm:$0xf] %v448
    %481 = vst [vmem:[%s3 + $0x68] sm:$0xf] %v449
    %482 = vst [vmem:[%s3 + $0x6c] sm:$0xf] %v450
    %483 = vst [vmem:[%s3 + $0x70] sm:$0xf] %v451
    %484 = vst [vmem:[%s3 + $0x74] sm:$0xf] %v452
    %485 = vst [vmem:[%s3 + $0x78] sm:$0xf] %v453
    %486 = vst [vmem:[%s3 + $0x7c] sm:$0xf] %v454
    // Predicated region
    $region26: #{_lambda_.1} parent=1 // pred_check
      _
    $region27: #{_lambda_.1} parent=1 // pred_check_branch
      %488 = sbr.rel (0) target = $region29
    $region28: #{_lambda_.1} parent=1 // pred_region
      _
    $region29: #{_lambda_.1} parent=1 // pred_fallthru
      _
    // Predicated region
    $region30: #{_lambda_.1} parent=1 // pred_check
      _
    $region31: #{_lambda_.1} parent=1 // pred_check_branch
      %490 = sbr.rel (0) target = $region33
    $region32: #{_lambda_.1} parent=1 // pred_region
      _
    $region33: #{_lambda_.1} parent=1 // pred_fallthru
      _
    %491 = vsyncpa [#allocation3], 1
    %492 = vsyncpa [#allocation5], 1

</llo_original>
